<compile_context>
chip_gen: v7x
topology: tpu7x:2x2x1
jax: 0.10.0
libtpu: 0.0.40
codegen_flags: <defaults>
</compile_context>

<pallas_src>
import functools

import jax
import jax.numpy as jnp
from jax.experimental import pallas as pl
from jax.experimental.pallas import tpu as pltpu


# ----------------------------------------------------------------------------
# Hardware-aware sizing
# ----------------------------------------------------------------------------
def _hw_budgets():
    """Returns (input_block_budget_bytes, vmem_limit_bytes), generation-aware."""
    try:
        cap = int(pltpu.get_tpu_info().vmem_capacity_bytes)
    except Exception:
        cap = 64 * 1024 * 1024                    # conservative (v7x-sized) fallback
    if cap >= 96 * 1024 * 1024:                   # v5e / v6e: 128 MiB physical VMEM
        return 24 * 1024 * 1024, 64 * 1024 * 1024
    return 12 * 1024 * 1024, 32 * 1024 * 1024     # v7x (64 MiB) / unknown


# ----------------------------------------------------------------------------
# Kernels (emit per-(n[, chunk]) partial sums: intersection, sum_p, sum_t)
# ----------------------------------------------------------------------------
def _dice_rows_kernel(x_ref, t_ref, oi_ref, op_ref, ot_ref,
                      inter_acc, p_acc, t_acc, *,
                      use_sigmoid: bool, rows_per_tile: int,
                      total_rows: int, needs_mask: bool):
    """Fast path.  Arrays are (N, C, R, 128); blocks (1, C, RT, 128).
    Grid = (N, NUM_CHUNKS, tiles_per_chunk); reduction axis last."""
    s_idx = pl.program_id(2)
    chunk = pl.program_id(1)

    @pl.when(s_idx == 0)
    def _():
        inter_acc[...] = jnp.zeros_like(inter_acc)
        p_acc[...] = jnp.zeros_like(p_acc)
        t_acc[...] = jnp.zeros_like(t_acc)

    x = x_ref[0].astype(jnp.float32)              # (C, RT, 128)
    t = t_ref[0].astype(jnp.float32)
    n_ch, rt = x.shape[0], x.shape[1]

    if use_sigmoid:
        p = jax.nn.sigmoid(x)
    else:
        # softmax over the channel axis: pure VPU (elementwise across C slabs)
        m = jnp.max(x, axis=0, keepdims=True)
        e = jnp.exp(x - m)
        p = e * pl.reciprocal(jnp.sum(e, axis=0, keepdims=True), approx=True)

    def _fold(a):  # (C, RT, 128) -> (C, 8, 128): VPU-only vreg adds
        return a.reshape(n_ch, rt // 8, 8, 128).sum(axis=1)

    def _accum(pv, tv):
        inter_acc[...] += _fold(pv * tv)
        p_acc[...] += _fold(pv)
        t_acc[...] += _fold(tv)

    if needs_mask:
        # Global (unclamped) tile index; phantom tiles (g >= n_tiles) and the
        # ragged last tile both end up with limit < rows_per_tile.
        g = chunk * pl.num_programs(2) + s_idx
        limit = total_rows - g * rows_per_tile

        @pl.when(limit >= rows_per_tile)          # interior tile: no mask work
        def _():
            _accum(p, t)

        @pl.when(limit < rows_per_tile)           # ragged / phantom tile
        def _():
            row = jax.lax.broadcasted_iota(jnp.int32, (1, rows_per_tile, 128), 1)
            valid = row < limit
            _accum(jnp.where(valid, p, 0.0), jnp.where(valid, t, 0.0))
    else:
        _accum(p, t)

    @pl.when(s_idx == pl.num_programs(2) - 1)
    def _():
        def _reduce(acc):                          # (C, 8, 128) -> (1, 1, 1, C)
            r = jnp.sum(acc[...], axis=1)          # cross-sublane (XLU), once
            return jnp.sum(r, axis=1).reshape(1, 1, 1, n_ch)
        oi_ref[...] = _reduce(inter_acc)
        op_ref[...] = _reduce(p_acc)
        ot_ref[...] = _reduce(t_acc)


def _dice_flat_kernel(x_ref, t_ref, oi_ref, op_ref, ot_ref,
                      inter_acc, p_acc, t_acc, *,
                      use_sigmoid: bool, tile_s: int, s_total: int,
                      needs_mask: bool):
    """Fallback path (S not a multiple of 128, or tiny S).
    Arrays are (N, C, S); blocks (1, C, TILE_S).  Grid = (N, num_s_tiles)."""
    s_idx = pl.program_id(1)

    @pl.when(s_idx == 0)
    def _():
        inter_acc[...] = jnp.zeros_like(inter_acc)
        p_acc[...] = jnp.zeros_like(p_acc)
        t_acc[...] = jnp.zeros_like(t_acc)

    x = x_ref[...].astype(jnp.float32)             # (1, C, TILE_S)
    t = t_ref[...].astype(jnp.float32)

    if use_sigmoid:
        p = jax.nn.sigmoid(x)
    else:
        m = jnp.max(x, axis=1, keepdims=True)
        e = jnp.exp(x - m)
        p = e * pl.reciprocal(jnp.sum(e, axis=1, keepdims=True), approx=True)

    if needs_mask:
        lane = jax.lax.broadcasted_iota(jnp.int32, p.shape, 2)
        valid = (s_idx * tile_s + lane) < s_total
        p = jnp.where(valid, p, 0.0)
        t = jnp.where(valid, t, 0.0)

    inter_acc[...] += jnp.sum(p * t, axis=2)       # (1, C)
    p_acc[...] += jnp.sum(p, axis=2)
    t_acc[...] += jnp.sum(t, axis=2)

    @pl.when(s_idx == pl.num_programs(1) - 1)
    def _():
        c = inter_acc.shape[1]
        oi_ref[...] = inter_acc[...].reshape(1, 1, c)
        op_ref[...] = p_acc[...].reshape(1, 1, c)
        ot_ref[...] = t_acc[...].reshape(1, 1, c)


# ----------------------------------------------------------------------------
# Wrapper paths
# ----------------------------------------------------------------------------
def _rows_path(x, t, use_sigmoid, block_budget, vmem_limit):
    N, C, R, _ = x.shape
    isz = jnp.dtype(x.dtype).itemsize + jnp.dtype(t.dtype).itemsize
    per_row = 2 * C * 128 * isz                    # both inputs, double-buffered
    fit = max(8, (block_budget // per_row) // 8 * 8)
    rt = max(8, min(fit, 1024, (R // 8) * 8))      # rows per tile (mult. of 8, <= R)
    n_tiles = pl.cdiv(R, rt)
    n_chunks = 2 if n_tiles >= 2 else 1            # feed both v7x TensorCores
    tpc = pl.cdiv(n_tiles, n_chunks)
    needs_mask = (R % rt != 0) or (n_chunks * tpc != n_tiles)

    kernel = functools.partial(
        _dice_rows_kernel, use_sigmoid=use_sigmoid, rows_per_tile=rt,
        total_rows=R, needs_mask=needs_mask)

    def in_map(n, c, s):
        # Clamp phantom tiles to the last valid tile; their contribution is
        # fully masked out inside the kernel.
        return (n, 0, jnp.minimum(c * tpc + s, n_tiles - 1), 0)

    def out_map(n, c, s):
        return (n, c, 0, 0)

    out = jax.ShapeDtypeStruct((N, n_chunks, 1, C), jnp.float32)
    inter, psum, tsum = pl.pallas_call(
        kernel,
        out_shape=(out, out, out),
        grid=(N, n_chunks, tpc),
        in_specs=[pl.BlockSpec((1, C, rt, 128), in_map),
                  pl.BlockSpec((1, C, rt, 128), in_map)],
        out_specs=(pl.BlockSpec((1, 1, 1, C), out_map),
                   pl.BlockSpec((1, 1, 1, C), out_map),
                   pl.BlockSpec((1, 1, 1, C), out_map)),
        scratch_shapes=[pltpu.VMEM((C, 8, 128), jnp.float32)] * 3,
        compiler_params=pltpu.CompilerParams(
            dimension_semantics=("parallel", "parallel", "arbitrary"),
            vmem_limit_bytes=vmem_limit),
    )(x, t)
    # combine the per-chunk partial sums -> (N, C)
    return (inter[:, :, 0, :].sum(axis=1),
            psum[:, :, 0, :].sum(axis=1),
            tsum[:, :, 0, :].sum(axis=1))


def _flat_path(x, t, use_sigmoid, block_budget, vmem_limit):
    N, C, S = x.shape
    isz = jnp.dtype(x.dtype).itemsize + jnp.dtype(t.dtype).itemsize
    per_lane = 2 * C * isz                         # both inputs, double-buffered
    fit = block_budget // per_lane
    if fit >= S:
        tile_s, needs_mask = S, False              # one full-extent block per batch
    else:
        tile_s = max(128, min(1024 * 128, (fit // 128) * 128))
        needs_mask = (S % tile_s) != 0
    n_tiles = pl.cdiv(S, tile_s)

    kernel = functools.partial(
        _dice_flat_kernel, use_sigmoid=use_sigmoid, tile_s=tile_s,
        s_total=S, needs_mask=needs_mask)

    out = jax.ShapeDtypeStruct((N, 1, C), jnp.float32)
    inter, psum, tsum = pl.pallas_call(
        kernel,
        out_shape=(out, out, out),
        grid=(N, n_tiles),
        in_specs=[pl.BlockSpec((1, C, tile_s), lambda n, s: (n, 0, s)),
                  pl.BlockSpec((1, C, tile_s), lambda n, s: (n, 0, s))],
        out_specs=(pl.BlockSpec((1, 1, C), lambda n, s: (n, 0, 0)),
                   pl.BlockSpec((1, 1, C), lambda n, s: (n, 0, 0)),
                   pl.BlockSpec((1, 1, C), lambda n, s: (n, 0, 0))),
        scratch_shapes=[pltpu.VMEM((1, C), jnp.float32)] * 3,
        compiler_params=pltpu.CompilerParams(
            dimension_semantics=("parallel", "arbitrary"),
            vmem_limit_bytes=vmem_limit),
    )(x, t)
    return inter[:, 0, :], psum[:, 0, :], tsum[:, 0, :]


@functools.partial(jax.jit, static_argnames=("smooth",))
def dice_loss(inputs, targets, smooth: float = 1.0):
    """inputs, targets: NCHW arrays (f32 or bf16). Same semantics as torch Dice.forward."""
    N, C, H, W = inputs.shape
    S = H * W
    use_sigmoid = (C == 1)
    block_budget, vmem_limit = _hw_budgets()

    if S % 128 == 0 and (S // 128) >= 8:
        # dense lane-packed layout; reshape of a contiguous array is free under jit
        x = inputs.reshape(N, C, S // 128, 128)
        t = targets.reshape(N, C, S // 128, 128)
        inter, psum, tsum = _rows_path(x, t, use_sigmoid, block_budget, vmem_limit)
    else:
        x = inputs.reshape(N, C, S)
        t = targets.reshape(N, C, S)
        inter, psum, tsum = _flat_path(x, t, use_sigmoid, block_budget, vmem_limit)

    # Tiny finish in JAX (exact divide), matching:
    #   dice = sum_c (2*inter + s)/(sum_p + sum_t + s); mean over batch; / C
    dice_nc = (2.0 * inter + smooth) / (psum + tsum + smooth)    # (N, C)
    return jnp.mean(jnp.sum(dice_nc, axis=1)) / jnp.float32(C)


# ----------------------------------------------------------------------------
# Pure-JAX reference (validation only)
# ----------------------------------------------------------------------------
def _dice_ref(inputs, targets, smooth: float = 1.0):
    N, C = inputs.shape[0], inputs.shape[1]
    inputs = inputs.astype(jnp.float32)
    targets = targets.astype(jnp.float32)
    p = jax.nn.softmax(inputs, axis=1) if C > 1 else jax.nn.sigmoid(inputs)
    p = p.reshape(N, C, -1)
    t = targets.reshape(N, C, -1)
    inter = jnp.sum(p * t, axis=2)
    dice_nc = (2.0 * inter + smooth) / (jnp.sum(p, axis=2) + jnp.sum(t, axis=2) + smooth)
    return jnp.mean(jnp.sum(dice_nc, axis=1)) / C


if __name__ == "__main__":
    key = jax.random.PRNGKey(0)

    # Case 1: small softmax path (spec-style NCHW) -> flat fallback path.
    k1, k2 = jax.random.split(key)
    x1 = jax.random.normal(k1, (2, 4, 16, 16), dtype=jnp.float32)
    t1 = jax.random.uniform(k2, (2, 4, 16, 16), dtype=jnp.float32)
    out1 = jax.block_until_ready(dice_loss(x1, t1, smooth=1.0))
    ref1 = _dice_ref(x1, t1, smooth=1.0)
    assert jnp.allclose(out1, ref1, atol=2e-3, rtol=2e-3), (out1, ref1)

    # Case 2: softmax, dense-rows fast path with ragged row tile + 2 chunks.
    k3, k4 = jax.random.split(k2)
    x2 = jax.random.normal(k3, (2, 4, 48, 48), dtype=jnp.float32)
    t2 = jax.random.uniform(k4, (2, 4, 48, 48), dtype=jnp.float32)
    out2 = jax.block_until_ready(dice_loss(x2, t2, smooth=1.0))
    ref2 = _dice_ref(x2, t2, smooth=1.0)
    assert jnp.allclose(out2, ref2, atol=2e-3, rtol=2e-3), (out2, ref2)

    # Case 3: C == 1 sigmoid, flat fallback path.
    k5, k6 = jax.random.split(k4)
    x3 = jax.random.normal(k5, (2, 1, 16, 16), dtype=jnp.float32)
    t3 = (jax.random.uniform(k6, (2, 1, 16, 16)) > 0.5).astype(jnp.float32)
    out3 = jax.block_until_ready(dice_loss(x3, t3, smooth=1.0))
    ref3 = _dice_ref(x3, t3, smooth=1.0)
    assert jnp.allclose(out3, ref3, atol=2e-3, rtol=2e-3), (out3, ref3)

    # Case 4: C == 1 sigmoid, dense-rows fast path.
    k7, k8 = jax.random.split(k6)
    x4 = jax.random.normal(k7, (2, 1, 48, 48), dtype=jnp.float32)
    t4 = (jax.random.uniform(k8, (2, 1, 48, 48)) > 0.5).astype(jnp.float32)
    out4 = jax.block_until_ready(dice_loss(x4, t4, smooth=1.0))
    ref4 = _dice_ref(x4, t4, smooth=1.0)
    assert jnp.allclose(out4, ref4, atol=2e-3, rtol=2e-3), (out4, ref4)

    print("KERNEL_OK")
</pallas_src>

<mosaic_0001>
module attributes {stable_mosaic.version = 11 : i64} {
  func.func @_dice_flat_kernel(%arg0: i32, %arg1: i32, %arg2: memref<1x4x256xf32, #tpu.memory_space<vmem>>, %arg3: memref<1x4x256xf32, #tpu.memory_space<vmem>>, %arg4: memref<1x1x4xf32, #tpu.memory_space<vmem>>, %arg5: memref<1x1x4xf32, #tpu.memory_space<vmem>>, %arg6: memref<1x1x4xf32, #tpu.memory_space<vmem>>, %arg7: memref<1x4xf32, #tpu.memory_space<vmem>>, %arg8: memref<1x4xf32, #tpu.memory_space<vmem>>, %arg9: memref<1x4xf32, #tpu.memory_space<vmem>>) attributes {dimension_semantics = [#tpu.dimension_semantics<parallel>, #tpu.dimension_semantics<arbitrary>], iteration_bounds = array<i64: 2, 1>, scalar_prefetch = 0 : i64, scratch_operands = 3 : i64, tpu.core_type = #tpu.core_type<tc>, window_params = [{transform_indices = @transform_0, window_bounds = array<i64: 1, 4, 256>}, {transform_indices = @transform_1, window_bounds = array<i64: 1, 4, 256>}, {transform_indices = @transform_2, window_bounds = array<i64: 1, 1, 4>}, {transform_indices = @transform_3, window_bounds = array<i64: 1, 1, 4>}, {transform_indices = @transform_4, window_bounds = array<i64: 1, 1, 4>}]} {
    %c0_i32 = arith.constant 0 : i32
    %0 = arith.cmpi eq, %arg1, %c0_i32 : i32
    %1 = arith.extui %0 : i1 to i32
    %c0_i32_0 = arith.constant 0 : i32
    %2 = arith.cmpi ne, %1, %c0_i32_0 : i32
    scf.if %2 {
      %cst_24 = arith.constant 0.000000e+00 : f32
      %31 = vector.broadcast %cst_24 : f32 to vector<1x4xf32>
      %c0_25 = arith.constant 0 : index
      %c0_26 = arith.constant 0 : index
      %32 = vector.load %arg7[%c0_25, %c0_26] : memref<1x4xf32, #tpu.memory_space<vmem>>, vector<1x4xf32>
      tpu.vector_store %arg7[%c0_25, %c0_26], %31 {strides = array<i32>} : memref<1x4xf32, #tpu.memory_space<vmem>>, vector<1x4xf32>,
      %cst_27 = arith.constant 0.000000e+00 : f32
      %33 = vector.broadcast %cst_27 : f32 to vector<1x4xf32>
      %c0_28 = arith.constant 0 : index
      %c0_29 = arith.constant 0 : index
      %34 = vector.load %arg8[%c0_28, %c0_29] : memref<1x4xf32, #tpu.memory_space<vmem>>, vector<1x4xf32>
      tpu.vector_store %arg8[%c0_28, %c0_29], %33 {strides = array<i32>} : memref<1x4xf32, #tpu.memory_space<vmem>>, vector<1x4xf32>,
      %cst_30 = arith.constant 0.000000e+00 : f32
      %35 = vector.broadcast %cst_30 : f32 to vector<1x4xf32>
      %c0_31 = arith.constant 0 : index
      %c0_32 = arith.constant 0 : index
      %36 = vector.load %arg9[%c0_31, %c0_32] : memref<1x4xf32, #tpu.memory_space<vmem>>, vector<1x4xf32>
      tpu.vector_store %arg9[%c0_31, %c0_32], %35 {strides = array<i32>} : memref<1x4xf32, #tpu.memory_space<vmem>>, vector<1x4xf32>,
    } else {
    }
    %c0 = arith.constant 0 : index
    %c0_1 = arith.constant 0 : index
    %c0_2 = arith.constant 0 : index
    %3 = vector.load %arg2[%c0, %c0_1, %c0_2] : memref<1x4x256xf32, #tpu.memory_space<vmem>>, vector<1x4x256xf32>
    %c0_3 = arith.constant 0 : index
    %c0_4 = arith.constant 0 : index
    %c0_5 = arith.constant 0 : index
    %4 = vector.load %arg3[%c0_3, %c0_4, %c0_5] : memref<1x4x256xf32, #tpu.memory_space<vmem>>, vector<1x4x256xf32>
    %cst = arith.constant dense<0xFF800000> : vector<1x256xf32>
    %5 = vector.multi_reduction <maximumf>, %3, %cst [1] : vector<1x4x256xf32> to vector<1x256xf32>
    %6 = vector.shape_cast %5 : vector<1x256xf32> to vector<1x1x256xf32>
    %7 = vector.broadcast %6 : vector<1x1x256xf32> to vector<1x4x256xf32>
    %8 = arith.subf %3, %7 : vector<1x4x256xf32>
    %9 = math.exp %8 : vector<1x4x256xf32>
    %cst_6 = arith.constant dense<0.000000e+00> : vector<1x256xf32>
    %10 = vector.multi_reduction <add>, %9, %cst_6 [1] : vector<1x4x256xf32> to vector<1x256xf32>
    %11 = vector.shape_cast %10 : vector<1x256xf32> to vector<1x1x256xf32>
    %12 = tpu.reciprocal %11 {approx = true} : vector<1x1x256xf32> -> vector<1x1x256xf32>
    %13 = vector.broadcast %12 : vector<1x1x256xf32> to vector<1x4x256xf32>
    %14 = arith.mulf %9, %13 : vector<1x4x256xf32>
    %c0_7 = arith.constant 0 : index
    %c0_8 = arith.constant 0 : index
    %15 = vector.load %arg7[%c0_7, %c0_8] : memref<1x4xf32, #tpu.memory_space<vmem>>, vector<1x4xf32>
    %16 = arith.mulf %14, %4 : vector<1x4x256xf32>
    %cst_9 = arith.constant dense<0.000000e+00> : vector<1x4xf32>
    %17 = vector.multi_reduction <add>, %16, %cst_9 [2] : vector<1x4x256xf32> to vector<1x4xf32>
    %18 = arith.addf %15, %17 : vector<1x4xf32>
    %c0_10 = arith.constant 0 : index
    %c0_11 = arith.constant 0 : index
    %19 = vector.load %arg7[%c0_10, %c0_11] : memref<1x4xf32, #tpu.memory_space<vmem>>, vector<1x4xf32>
    tpu.vector_store %arg7[%c0_10, %c0_11], %18 {strides = array<i32>} : memref<1x4xf32, #tpu.memory_space<vmem>>, vector<1x4xf32>,
    %c0_12 = arith.constant 0 : index
    %c0_13 = arith.constant 0 : index
    %20 = vector.load %arg8[%c0_12, %c0_13] : memref<1x4xf32, #tpu.memory_space<vmem>>, vector<1x4xf32>
    %cst_14 = arith.constant dense<0.000000e+00> : vector<1x4xf32>
    %21 = vector.multi_reduction <add>, %14, %cst_14 [2] : vector<1x4x256xf32> to vector<1x4xf32>
    %22 = arith.addf %20, %21 : vector<1x4xf32>
    %c0_15 = arith.constant 0 : index
    %c0_16 = arith.constant 0 : index
    %23 = vector.load %arg8[%c0_15, %c0_16] : memref<1x4xf32, #tpu.memory_space<vmem>>, vector<1x4xf32>
    tpu.vector_store %arg8[%c0_15, %c0_16], %22 {strides = array<i32>} : memref<1x4xf32, #tpu.memory_space<vmem>>, vector<1x4xf32>,
    %c0_17 = arith.constant 0 : index
    %c0_18 = arith.constant 0 : index
    %24 = vector.load %arg9[%c0_17, %c0_18] : memref<1x4xf32, #tpu.memory_space<vmem>>, vector<1x4xf32>
    %cst_19 = arith.constant dense<0.000000e+00> : vector<1x4xf32>
    %25 = vector.multi_reduction <add>, %4, %cst_19 [2] : vector<1x4x256xf32> to vector<1x4xf32>
    %26 = arith.addf %24, %25 : vector<1x4xf32>
    %c0_20 = arith.constant 0 : index
    %c0_21 = arith.constant 0 : index
    %27 = vector.load %arg9[%c0_20, %c0_21] : memref<1x4xf32, #tpu.memory_space<vmem>>, vector<1x4xf32>
    tpu.vector_store %arg9[%c0_20, %c0_21], %26 {strides = array<i32>} : memref<1x4xf32, #tpu.memory_space<vmem>>, vector<1x4xf32>,
    %c0_i32_22 = arith.constant 0 : i32
    %28 = arith.cmpi eq, %arg1, %c0_i32_22 : i32
    %29 = arith.extui %28 : i1 to i32
    %c0_i32_23 = arith.constant 0 : i32
    %30 = arith.cmpi ne, %29, %c0_i32_23 : i32
    scf.if %30 {
      %c0_24 = arith.constant 0 : index
      %c0_25 = arith.constant 0 : index
      %31 = vector.load %arg7[%c0_24, %c0_25] : memref<1x4xf32, #tpu.memory_space<vmem>>, vector<1x4xf32>
      %32 = vector.shape_cast %31 : vector<1x4xf32> to vector<1x1x4xf32>
      %c0_26 = arith.constant 0 : index
      %c0_27 = arith.constant 0 : index
      %c0_28 = arith.constant 0 : index
      %33 = vector.load %arg4[%c0_26, %c0_27, %c0_28] : memref<1x1x4xf32, #tpu.memory_space<vmem>>, vector<1x1x4xf32>
      tpu.vector_store %arg4[%c0_26, %c0_27, %c0_28], %32 {strides = array<i32>} : memref<1x1x4xf32, #tpu.memory_space<vmem>>, vector<1x1x4xf32>,
      %c0_29 = arith.constant 0 : index
      %c0_30 = arith.constant 0 : index
      %34 = vector.load %arg8[%c0_29, %c0_30] : memref<1x4xf32, #tpu.memory_space<vmem>>, vector<1x4xf32>
      %35 = vector.shape_cast %34 : vector<1x4xf32> to vector<1x1x4xf32>
      %c0_31 = arith.constant 0 : index
      %c0_32 = arith.constant 0 : index
      %c0_33 = arith.constant 0 : index
      %36 = vector.load %arg5[%c0_31, %c0_32, %c0_33] : memref<1x1x4xf32, #tpu.memory_space<vmem>>, vector<1x1x4xf32>
      tpu.vector_store %arg5[%c0_31, %c0_32, %c0_33], %35 {strides = array<i32>} : memref<1x1x4xf32, #tpu.memory_space<vmem>>, vector<1x1x4xf32>,
      %c0_34 = arith.constant 0 : index
      %c0_35 = arith.constant 0 : index
      %37 = vector.load %arg9[%c0_34, %c0_35] : memref<1x4xf32, #tpu.memory_space<vmem>>, vector<1x4xf32>
      %38 = vector.shape_cast %37 : vector<1x4xf32> to vector<1x1x4xf32>
      %c0_36 = arith.constant 0 : index
      %c0_37 = arith.constant 0 : index
      %c0_38 = arith.constant 0 : index
      %39 = vector.load %arg6[%c0_36, %c0_37, %c0_38] : memref<1x1x4xf32, #tpu.memory_space<vmem>>, vector<1x1x4xf32>
      tpu.vector_store %arg6[%c0_36, %c0_37, %c0_38], %38 {strides = array<i32>} : memref<1x1x4xf32, #tpu.memory_space<vmem>>, vector<1x1x4xf32>,
    } else {
    }
    return
  }
  func.func @transform_0(%arg0: i32, %arg1: i32) -> (i32, i32, i32) {
    %c0_i32 = arith.constant 0 : i32
    %c0_i32_0 = arith.constant 0 : i32
    return %arg0, %c0_i32, %arg1 : i32, i32, i32
  }
  func.func @transform_1(%arg0: i32, %arg1: i32) -> (i32, i32, i32) {
    %c0_i32 = arith.constant 0 : i32
    %c0_i32_0 = arith.constant 0 : i32
    return %arg0, %c0_i32, %arg1 : i32, i32, i32
  }
  func.func @transform_2(%arg0: i32, %arg1: i32) -> (i32, i32, i32) {
    %c0_i32 = arith.constant 0 : i32
    %c0_i32_0 = arith.constant 0 : i32
    %c0_i32_1 = arith.constant 0 : i32
    return %arg0, %c0_i32, %c0_i32_0 : i32, i32, i32
  }
  func.func @transform_3(%arg0: i32, %arg1: i32) -> (i32, i32, i32) {
    %c0_i32 = arith.constant 0 : i32
    %c0_i32_0 = arith.constant 0 : i32
    %c0_i32_1 = arith.constant 0 : i32
    return %arg0, %c0_i32, %c0_i32_0 : i32, i32, i32
  }
  func.func @transform_4(%arg0: i32, %arg1: i32) -> (i32, i32, i32) {
    %c0_i32 = arith.constant 0 : i32
    %c0_i32_0 = arith.constant 0 : i32
    %c0_i32_1 = arith.constant 0 : i32
    return %arg0, %c0_i32, %c0_i32_0 : i32, i32, i32
  }
}

</mosaic_0001>

<llo_original>
// kernel: dice_loss.1
$region0: #{dice_loss.1}
  #allocation0 [shape = 'u32[]', space=smem, size = 0x4, offset = 0x4, fixed_abs, tag = 'smem constant byte address 0x4 - core index']
  #allocation1 [shape = 'u32[144,128]{1,0:T(1,128)}', space=vmem, size = 0x12000, scoped, tag = 'internal scratch']
  #allocation2 [shape = 'f32[1,4]{1,0:T(1,128)}', space=vmem, size = 0x200, scoped, tag = 'scratch operand']
  #allocation3 [shape = 'f32[1,4]{1,0:T(1,128)}', space=vmem, size = 0x200, scoped, tag = 'scratch operand']
  #allocation4 [shape = 'f32[1,4]{1,0:T(1,128)}', space=vmem, size = 0x200, scoped, tag = 'scratch operand']
  %s0 = inlined_call_operand.vmem [shape: f32[2,4,256], index: 0, kind: input, shape index: {}]
  %s1 = inlined_call_operand.vmem [shape: f32[2,4,256], index: 1, kind: input, shape index: {}]
  %s2 = inlined_call_operand.vmem [shape: f32[2,1,4], index: 2, kind: output, shape index: {0}]
  %s3 = inlined_call_operand.vmem [shape: f32[2,1,4], index: 3, kind: output, shape index: {1}]
  %s4 = inlined_call_operand.vmem [shape: f32[2,1,4], index: 4, kind: output, shape index: {2}]
  %5 = xla_tuple %s2, %s3, %s4
  %s6 = sld [smem:[#allocation0]]
  $region65: #{dice_loss.1} parent=0
    _
  %s8 = ssub.s32 1, %s6
  %s9 = scalar_select 0, %s8, %s6
  loop: start=0, step=1, limit=4
  $region2: #{dice_loss.1} parent=0 // loop_pre_header
    _
  $region3: #{dice_loss.1} parent=0 // loop_header
    %s11 = sphi 0, %s15
    %p12 = scmp.ge.s32.totalorder %s11, 4
    %s18 = sphi 0, %s30
    %s19 = sphi 0, %s26
    %s20 = sphi 0, %s18
    %s21 = sphi 0, %s19
    %s22 = sphi 0, %s20
    %s23 = sphi 0, %s21
    %s35 = sphi 0, %s37
    %s38 = sphi 0, %s35
    %s39 = sphi 0, %s38
    %s55 = sphi 0, %s39
    %s63 = sphi 0, %s65
    %s66 = sphi 0, %s63
    %s67 = sphi 0, %s66
    %s83 = sphi 0, %s67
    %s89 = sphi 0, %s91
    %s92 = sphi 0, %s89
    %s93 = sphi 0, %s92
    %s109 = sphi 0, %s93
    %s115 = sphi 0, %s117
    %s118 = sphi 0, %s115
    %s119 = sphi 0, %s118
    %s135 = sphi 0, %s119
    %s141 = sphi 0, %s143
    %s144 = sphi 0, %s141
    %s145 = sphi 0, %s144
    %s161 = sphi 0, %s145
  $region4: #{dice_loss.1} parent=0 // loop_header_branch
    %14 = sbr.rel (%p12) target = $region8
  $region5: #{dice_loss.1} parent=0 // loop_body
    %s16 = ssub.s32 %s11, 1
    %s17 = ssub.s32 %s11, 2
    %s24 = sadd.s32 1, %s19
    %p25 = scmp.ge.s32.totalorder %s24, 1
    %s26 = scalar_select %p25, 0, %s24
    %s27 = sadd.s32 1, %s18
    %s28 = scalar_select %p25, %s27, %s18
    %p29 = scmp.ge.s32.totalorder %s28, 2
    %s30 = scalar_select %p29, 0, %s28
    %s31 = ssub.s32 %s18, %s30
    %s32 = ssub.s32 %s19, %s26
    %s33 = sor.u32 %s31, %s32
    %p34 = scmp.eq.s32.totalorder %s33, 0
    %s36 = sadd.s32 %s35, 1
    %s37 = scalar_select %p34, %s35, %s36
    %p40 = pneg %p34
    %p41 = scmp.eq.s32.totalorder %s11, 1
    %p42 = por %p40, %p41
    %p43 = scmp.ne.s32.totalorder %s35, %s38
    %p44 = scmp.eq.s32.totalorder %s11, 0
    %p45 = por %p43, %p44
    %p46 = scmp.ne.s32.totalorder %s35, %s38
    %p47 = scmp.eq.s32.totalorder %s16, 1
    %p48 = por %p46, %p47
    %p49 = scmp.ne.s32.totalorder %s38, %s39
    %p50 = scmp.eq.s32.totalorder %s16, 0
    %p51 = por %p49, %p50
    %p52 = scmp.ne.s32.totalorder %s38, %s39
    %p53 = scmp.eq.s32.totalorder %s17, 1
    %p54 = por %p52, %p53
    %p56 = scmp.ne.s32.totalorder %s39, %s55
    %p57 = scmp.eq.s32.totalorder %s17, 0
    %p58 = por %p56, %p57
    %s59 = ssub.s32 %s18, %s30
    %s60 = ssub.s32 %s19, %s26
    %s61 = sor.u32 %s59, %s60
    %p62 = scmp.eq.s32.totalorder %s61, 0
    %s64 = sadd.s32 %s63, 1
    %s65 = scalar_select %p62, %s63, %s64
    %p68 = pneg %p62
    %p69 = scmp.eq.s32.totalorder %s11, 1
    %p70 = por %p68, %p69
    %p71 = scmp.ne.s32.totalorder %s63, %s66
    %p72 = scmp.eq.s32.totalorder %s11, 0
    %p73 = por %p71, %p72
    %p74 = scmp.ne.s32.totalorder %s63, %s66
    %p75 = scmp.eq.s32.totalorder %s16, 1
    %p76 = por %p74, %p75
    %p77 = scmp.ne.s32.totalorder %s66, %s67
    %p78 = scmp.eq.s32.totalorder %s16, 0
    %p79 = por %p77, %p78
    %p80 = scmp.ne.s32.totalorder %s66, %s67
    %p81 = scmp.eq.s32.totalorder %s17, 1
    %p82 = por %p80, %p81
    %p84 = scmp.ne.s32.totalorder %s67, %s83
    %p85 = scmp.eq.s32.totalorder %s17, 0
    %p86 = por %p84, %p85
    %s87 = ssub.s32 %s18, %s30
    %p88 = scmp.eq.s32.totalorder %s87, 0
    %s90 = sadd.s32 %s89, 1
    %s91 = scalar_select %p88, %s89, %s90
    %p94 = pneg %p88
    %p95 = scmp.eq.s32.totalorder %s11, 1
    %p96 = por %p94, %p95
    %p97 = scmp.ne.s32.totalorder %s89, %s92
    %p98 = scmp.eq.s32.totalorder %s11, 0
    %p99 = por %p97, %p98
    %p100 = scmp.ne.s32.totalorder %s89, %s92
    %p101 = scmp.eq.s32.totalorder %s16, 1
    %p102 = por %p100, %p101
    %p103 = scmp.ne.s32.totalorder %s92, %s93
    %p104 = scmp.eq.s32.totalorder %s16, 0
    %p105 = por %p103, %p104
    %p106 = scmp.ne.s32.totalorder %s92, %s93
    %p107 = scmp.eq.s32.totalorder %s17, 1
    %p108 = por %p106, %p107
    %p110 = scmp.ne.s32.totalorder %s93, %s109
    %p111 = scmp.eq.s32.totalorder %s17, 0
    %p112 = por %p110, %p111
    %s113 = ssub.s32 %s18, %s30
    %p114 = scmp.eq.s32.totalorder %s113, 0
    %s116 = sadd.s32 %s115, 1
    %s117 = scalar_select %p114, %s115, %s116
    %p120 = pneg %p114
    %p121 = scmp.eq.s32.totalorder %s11, 1
    %p122 = por %p120, %p121
    %p123 = scmp.ne.s32.totalorder %s115, %s118
    %p124 = scmp.eq.s32.totalorder %s11, 0
    %p125 = por %p123, %p124
    %p126 = scmp.ne.s32.totalorder %s115, %s118
    %p127 = scmp.eq.s32.totalorder %s16, 1
    %p128 = por %p126, %p127
    %p129 = scmp.ne.s32.totalorder %s118, %s119
    %p130 = scmp.eq.s32.totalorder %s16, 0
    %p131 = por %p129, %p130
    %p132 = scmp.ne.s32.totalorder %s118, %s119
    %p133 = scmp.eq.s32.totalorder %s17, 1
    %p134 = por %p132, %p133
    %p136 = scmp.ne.s32.totalorder %s119, %s135
    %p137 = scmp.eq.s32.totalorder %s17, 0
    %p138 = por %p136, %p137
    %s139 = ssub.s32 %s18, %s30
    %p140 = scmp.eq.s32.totalorder %s139, 0
    %s142 = sadd.s32 %s141, 1
    %s143 = scalar_select %p140, %s141, %s142
    %p146 = pneg %p140
    %p147 = scmp.eq.s32.totalorder %s11, 1
    %p148 = por %p146, %p147
    %p149 = scmp.ne.s32.totalorder %s141, %s144
    %p150 = scmp.eq.s32.totalorder %s11, 0
    %p151 = por %p149, %p150
    %p152 = scmp.ne.s32.totalorder %s141, %s144
    %p153 = scmp.eq.s32.totalorder %s16, 1
    %p154 = por %p152, %p153
    %p155 = scmp.ne.s32.totalorder %s144, %s145
    %p156 = scmp.eq.s32.totalorder %s16, 0
    %p157 = por %p155, %p156
    %p158 = scmp.ne.s32.totalorder %s144, %s145
    %p159 = scmp.eq.s32.totalorder %s17, 1
    %p160 = por %p158, %p159
    %p162 = scmp.ne.s32.totalorder %s145, %s161
    %p163 = scmp.eq.s32.totalorder %s17, 0
    %p164 = por %p162, %p163
    %p165 = scmp.le.s32.totalorder 1, %s11
    %p166 = scmp.lt.s32.totalorder %s11, 3
    %p167 = pnand %p165, %p166
    %p168 = pneg %p167
    // Predicated region
    $region9: #{dice_loss.1} parent=5 // pred_check
      _
    $region10: #{dice_loss.1} parent=5 // pred_check_branch
      %170 = sbr.rel (%p167) target = $region12
    $region11: #{dice_loss.1} parent=5 // pred_region
      %s171 = ssub.s32 %s11, 1
    $region12: #{dice_loss.1} parent=5 // pred_fallthru
      _
    %p172 = scmp.lt.s32.totalorder %s11, 2
    // Predicated region
    $region13: #{dice_loss.1} parent=5 // pred_check
      %p173 = pneg %p172
    $region14: #{dice_loss.1} parent=5 // pred_check_branch
      %175 = sbr.rel (%p173) target = $region16
    $region15: #{dice_loss.1} parent=5 // pred_region
      // Predicated region
      $region17: #{dice_loss.1} parent=15 // pred_check
        %p176 = pneg %p45
      $region18: #{dice_loss.1} parent=15 // pred_check_branch
        %178 = sbr.rel (%p176) target = $region20
      $region19: #{dice_loss.1} parent=15 // pred_region
        %s179 = smul.u32 2, %s19
        %p180 = scmp.lt.s32.totalorder %s18, 1
        %s181 = scalar_select %p180, %s18, 1
        %p182 = scmp.lt.s32.totalorder %s179, 1
        %s183 = scalar_select %p182, %s179, 1
        %s184 = smul.addr %s181, 2
        %s185 = sadd.s32 %s183, %s184
        %s186 = smul.addr %s185, 4
        %s187 = scalar_lea.vmem %s0, %s186
        %s188 = smul.u32 2, %s19
      $region20: #{dice_loss.1} parent=15 // pred_fallthru
        _
      // Predicated region
      $region21: #{dice_loss.1} parent=15 // pred_check
        %p189 = pneg %p73
      $region22: #{dice_loss.1} parent=15 // pred_check_branch
        %191 = sbr.rel (%p189) target = $region24
      $region23: #{dice_loss.1} parent=15 // pred_region
        %s192 = smul.u32 2, %s19
        %p193 = scmp.lt.s32.totalorder %s18, 1
        %s194 = scalar_select %p193, %s18, 1
        %p195 = scmp.lt.s32.totalorder %s192, 1
        %s196 = scalar_select %p195, %s192, 1
        %s197 = smul.addr %s194, 2
        %s198 = sadd.s32 %s196, %s197
        %s199 = smul.addr %s198, 4
        %s200 = scalar_lea.vmem %s1, %s199
        %s201 = smul.u32 2, %s19
      $region24: #{dice_loss.1} parent=15 // pred_fallthru
        _
    $region16: #{dice_loss.1} parent=5 // pred_fallthru
      _
    %p202 = scmp.le.s32.totalorder 1, %s11
    %p203 = scmp.lt.s32.totalorder %s11, 3
    %p204 = pnand %p202, %p203
    %p205 = pneg %p204
    // Predicated region
    $region25: #{dice_loss.1} parent=5 // pred_check
      _
    $region26: #{dice_loss.1} parent=5 // pred_check_branch
      %207 = sbr.rel (%p204) target = $region28
    $region27: #{dice_loss.1} parent=5 // pred_region
      %s208 = ssub.s32 %s11, 1
      %s209 = smul.u32 2, %s21
      %p210 = scmp.lt.s32.totalorder %s20, 1
      %s211 = scalar_select %p210, %s20, 1
      %p212 = scmp.lt.s32.totalorder %s209, 1
      %s213 = scalar_select %p212, %s209, 1
      %s214 = smul.addr %s211, 2
      %s215 = sadd.s32 %s213, %s214
      %s216 = smul.addr %s215, 4
      %s217 = scalar_lea.vmem %s0, %s216
      %p218 = pneg %p51
      %p219 = pneg %p48
      %s220 = smul.u32 2, %s21
      %p221 = scmp.lt.s32.totalorder %s20, 1
      %s222 = scalar_select %p221, %s20, 1
      %p223 = scmp.lt.s32.totalorder %s220, 1
      %s224 = scalar_select %p223, %s220, 1
      %s225 = smul.addr %s222, 2
      %s226 = sadd.s32 %s224, %s225
      %s227 = smul.addr %s226, 4
      %s228 = scalar_lea.vmem %s1, %s227
      %p229 = pneg %p79
      %p230 = pneg %p76
      %p231 = pneg %p105
      %p232 = pneg %p102
      %p233 = scmp.lt.s32.totalorder %s20, 1
      %s234 = scalar_select %p233, %s20, 1
      %s235 = scalar_lea.vmem %s2, %s234
      %p236 = pneg %p131
      %p237 = pneg %p128
      %p238 = scmp.lt.s32.totalorder %s20, 1
      %s239 = scalar_select %p238, %s20, 1
      %s240 = scalar_lea.vmem %s3, %s239
      %p241 = pneg %p157
      %p242 = pneg %p154
      %p243 = scmp.lt.s32.totalorder %s20, 1
      %s244 = scalar_select %p243, %s20, 1
      %s245 = scalar_lea.vmem %s4, %s244
      %s246 = smul.u32 2, %s21
      %p247 = scmp.lt.s32.totalorder %s20, 1
      %s248 = scalar_select %p247, %s20, 1
      %p249 = scmp.lt.s32.totalorder %s246, 1
      %s250 = scalar_select %p249, %s246, 1
      %s251 = smul.addr %s248, 2
      %s252 = sadd.s32 %s250, %s251
      %s253 = smul.addr %s252, 4
      %s254 = scalar_lea.vmem %s0, %s253
      %s255 = smul.u32 2, %s21
      %s256 = smul.u32 2, %s21
      %p257 = scmp.lt.s32.totalorder %s20, 1
      %s258 = scalar_select %p257, %s20, 1
      %p259 = scmp.lt.s32.totalorder %s256, 1
      %s260 = scalar_select %p259, %s256, 1
      %s261 = smul.addr %s258, 2
      %s262 = sadd.s32 %s260, %s261
      %s263 = smul.addr %s262, 4
      %s264 = scalar_lea.vmem %s1, %s263
      %s265 = smul.u32 2, %s21
      %p266 = scmp.lt.s32.totalorder %s20, 1
      %s267 = scalar_select %p266, %s20, 1
      %s268 = scalar_lea.vmem %s2, %s267
      %p269 = scmp.lt.s32.totalorder %s20, 1
      %s270 = scalar_select %p269, %s20, 1
      %s271 = scalar_lea.vmem %s3, %s270
      %p272 = scmp.lt.s32.totalorder %s20, 1
      %s273 = scalar_select %p272, %s20, 1
      %s274 = scalar_lea.vmem %s4, %s273
      %p275 = scmp.eq.s32.totalorder %s21, 0
      // Predicated region
      $region29: #{dice_loss.1} parent=27 // pred_check
        %p276 = pneg %p275
      $region30: #{dice_loss.1} parent=27 // pred_check_branch
        %278 = sbr.rel (%p276) target = $region32
      $region31: #{dice_loss.1} parent=27 // pred_region
        %vm279 = vcmask 24576
        %280 = vst.msk [vmem:[#allocation2] sm:$0x1] %vm279, 0.0
        %281 = vst.msk [vmem:[#allocation3] sm:$0x1] %vm279, 0.0
        %282 = vst.msk [vmem:[#allocation4] sm:$0x1] %vm279, 0.0
      $region32: #{dice_loss.1} parent=27 // pred_fallthru
        _
      %v283 = vld [vmem:[%s254] sm:$0xff]
      %v284 = vld [vmem:[%s264] sm:$0xff]
      %v286 = vcombine.high %v283, %v283
      %vm288 = vcmask 1043456
      %v289 = vsel %vm288, %v283, -inf
      %v290 = vrot.slane %v289, 4
      %v291 = vmax.f32 %v289, %v290
      %v292 = vrot.slane %v291, 2
      %v293 = vmax.f32 %v291, %v292
      %v294 = vrot.slane %v293, 1
      %v295 = vmax.f32 %v293, %v294
      %v296 = vsel %vm288, %v286, -inf
      %v297 = vrot.slane %v296, 4
      %v298 = vmax.f32 %v296, %v297
      %v299 = vrot.slane %v298, 2
      %v300 = vmax.f32 %v298, %v299
      %v301 = vrot.slane %v300, 1
      %v302 = vmax.f32 %v300, %v301
      %v305 = vcombine.low %v295, %v302
      %v307 = vsub.f32 %v283, %v305
      %v308 = vmul.f32 %v307, 1.442695
      %v309 = vpow.pop %v308
      %v311 = vcombine.high %v309, %v309
      %v313 = vsel %vm288, %v309, 0.0
      %v314 = vrot.slane %v313, 4
      %v315 = vadd.f32 %v313, %v314
      %v316 = vrot.slane %v315, 2
      %v317 = vadd.f32 %v315, %v316
      %v318 = vrot.slane %v317, 1
      %v319 = vadd.f32 %v317, %v318
      %v320 = vsel %vm288, %v311, 0.0
      %v321 = vrot.slane %v320, 4
      %v322 = vadd.f32 %v320, %v321
      %v323 = vrot.slane %v322, 2
      %v324 = vadd.f32 %v322, %v323
      %v325 = vrot.slane %v324, 1
      %v326 = vadd.f32 %v324, %v325
      %v327 = vrcp.pop %v319
      %v328 = vrcp.pop %v326
      %v331 = vcombine.low %v327, %v328
      %v333 = vmul.f32 %v309, %v331
      %v334 = vld [vmem:[#allocation2] sm:$0x1]
      %v335 = vmul.f32 %v333, %v284
      %v337 = vcombine.high %v335, %v335
      %v339 = vsel %vm288, %v335, 0.0
      %v340 = vsel %vm288, %v337, 0.0
      %v341 = vadd.f32 %v339, %v340
      %342 = vadd.xlane.f32.xlu0 %v341
      %v343 = vpop.xlane.xlu0 %342
      %v345 = vlaneseq
      %v346 = vshrl.u32 %v345, 7
      %v347 = vsub.s32 0, %v346
      %v348 = vrot.slane %v343, %v347
      %v349 = vlaneseq
      %v350 = vshrl.u32 %v349, 7
      %v351 = vsub.s32 1, %v350
      %v352 = vrot.slane %v343, %v351
      %v353 = vlaneseq
      %v354 = vshrl.u32 %v353, 7
      %v355 = vsub.s32 2, %v354
      %v356 = vrot.slane %v343, %v355
      %v357 = vlaneseq
      %v358 = vshrl.u32 %v357, 7
      %v359 = vsub.s32 3, %v358
      %v360 = vrot.slane %v343, %v359
      %v361 = vcombine.low %v348, %v352
      %v362 = vcombine.low %v356, %v360
      %v364 = vunpack.c.l.s4 1966171168
      %v365 = vunpack.c.0.s8 %v364
      %v366 = vlaneseq
      %v367 = vshrl.u32 %v366, 7
      %v368 = vsub.s32 %v365, %v367
      %v369 = vrot.slane %v361, %v368
      %v371 = vunpack.c.l.s4 1966171168
      %v372 = vunpack.c.0.s8 %v371
      %v373 = vlaneseq
      %v374 = vshrl.u32 %v373, 7
      %v375 = vsub.s32 %v372, %v374
      %v376 = vrot.slane %v362, %v375
      %v377 = vcombine.low %v369, %v376
      %v379 = vunpack.c.l.s4 1966171168
      %v380 = vunpack.c.0.s8 %v379
      %v381 = vlaneseq
      %v382 = vshrl.u32 %v381, 7
      %v383 = vsub.s32 %v380, %v382
      %v384 = vrot.slane %v377, %v383
      %385 = vset.pattern.permute.xlu0 0
      %386 = vperm.xlu0 %385, %v384
      %v387 = vpop.permute.xlu0 %386
      %v388 = vlaneseq
      %v389 = vand.u32 %v388, 127
      %v390 = vlaneseq
      %v391 = vshrl.u32 %v390, 7
      %v392 = vsub.s32 %v389, %v391
      %v393 = vrot.slane %v387, %v392
      %v395 = vunpack.c.l.s4 1966171168
      %v396 = vunpack.c.0.s8 %v395
      %v397 = vlaneseq
      %v398 = vshrl.u32 %v397, 7
      %v399 = vsub.s32 %v396, %v398
      %v400 = vrot.slane %v393, %v399
      %v402 = vunpack.c.l.s4 1966171168
      %v403 = vunpack.c.0.s8 %v402
      %v404 = vlaneseq
      %v405 = vshrl.u32 %v404, 7
      %v406 = vsub.s32 %v403, %v405
      %v407 = vrot.slane %v400, %v406
      %v409 = vadd.f32 %v334, %v407
      %vm410 = vcmask 24576
      %411 = vst.msk [vmem:[#allocation2] sm:$0x1] %vm410, %v409
      %v412 = vld [vmem:[#allocation3] sm:$0x1]
      %v414 = vcombine.high %v333, %v333
      %v416 = vsel %vm288, %v333, 0.0
      %v417 = vsel %vm288, %v414, 0.0
      %v418 = vadd.f32 %v416, %v417
      %419 = vadd.xlane.f32.xlu0 %v418
      %v420 = vpop.xlane.xlu0 %419
      %v422 = vlaneseq
      %v423 = vshrl.u32 %v422, 7
      %v424 = vsub.s32 0, %v423
      %v425 = vrot.slane %v420, %v424
      %v426 = vlaneseq
      %v427 = vshrl.u32 %v426, 7
      %v428 = vsub.s32 1, %v427
      %v429 = vrot.slane %v420, %v428
      %v430 = vlaneseq
      %v431 = vshrl.u32 %v430, 7
      %v432 = vsub.s32 2, %v431
      %v433 = vrot.slane %v420, %v432
      %v434 = vlaneseq
      %v435 = vshrl.u32 %v434, 7
      %v436 = vsub.s32 3, %v435
      %v437 = vrot.slane %v420, %v436
      %v438 = vcombine.low %v425, %v429
      %v439 = vcombine.low %v433, %v437
      %v441 = vunpack.c.l.s4 1966171168
      %v442 = vunpack.c.0.s8 %v441
      %v443 = vlaneseq
      %v444 = vshrl.u32 %v443, 7
      %v445 = vsub.s32 %v442, %v444
      %v446 = vrot.slane %v438, %v445
      %v448 = vunpack.c.l.s4 1966171168
      %v449 = vunpack.c.0.s8 %v448
      %v450 = vlaneseq
      %v451 = vshrl.u32 %v450, 7
      %v452 = vsub.s32 %v449, %v451
      %v453 = vrot.slane %v439, %v452
      %v454 = vcombine.low %v446, %v453
      %v456 = vunpack.c.l.s4 1966171168
      %v457 = vunpack.c.0.s8 %v456
      %v458 = vlaneseq
      %v459 = vshrl.u32 %v458, 7
      %v460 = vsub.s32 %v457, %v459
      %v461 = vrot.slane %v454, %v460
      %462 = vset.pattern.permute.xlu0 0
      %463 = vperm.xlu0 %462, %v461
      %v464 = vpop.permute.xlu0 %463
      %v465 = vlaneseq
      %v466 = vshrl.u32 %v465, 7
      %v467 = vsub.s32 %v389, %v466
      %v468 = vrot.slane %v464, %v467
      %v470 = vunpack.c.l.s4 1966171168
      %v471 = vunpack.c.0.s8 %v470
      %v472 = vlaneseq
      %v473 = vshrl.u32 %v472, 7
      %v474 = vsub.s32 %v471, %v473
      %v475 = vrot.slane %v468, %v474
      %v477 = vunpack.c.l.s4 1966171168
      %v478 = vunpack.c.0.s8 %v477
      %v479 = vlaneseq
      %v480 = vshrl.u32 %v479, 7
      %v481 = vsub.s32 %v478, %v480
      %v482 = vrot.slane %v475, %v481
      %v484 = vadd.f32 %v412, %v482
      %485 = vst.msk [vmem:[#allocation3] sm:$0x1] %vm410, %v484
      %v486 = vld [vmem:[#allocation4] sm:$0x1]
      %v488 = vcombine.high %v284, %v284
      %v490 = vsel %vm288, %v284, 0.0
      %v491 = vsel %vm288, %v488, 0.0
      %v492 = vadd.f32 %v490, %v491
      %493 = vadd.xlane.f32.xlu0 %v492
      %v494 = vpop.xlane.xlu0 %493
      %v496 = vlaneseq
      %v497 = vshrl.u32 %v496, 7
      %v498 = vsub.s32 0, %v497
      %v499 = vrot.slane %v494, %v498
      %v500 = vlaneseq
      %v501 = vshrl.u32 %v500, 7
      %v502 = vsub.s32 1, %v501
      %v503 = vrot.slane %v494, %v502
      %v504 = vlaneseq
      %v505 = vshrl.u32 %v504, 7
      %v506 = vsub.s32 2, %v505
      %v507 = vrot.slane %v494, %v506
      %v508 = vlaneseq
      %v509 = vshrl.u32 %v508, 7
      %v510 = vsub.s32 3, %v509
      %v511 = vrot.slane %v494, %v510
      %v512 = vcombine.low %v499, %v503
      %v513 = vcombine.low %v507, %v511
      %v515 = vunpack.c.l.s4 1966171168
      %v516 = vunpack.c.0.s8 %v515
      %v517 = vlaneseq
      %v518 = vshrl.u32 %v517, 7
      %v519 = vsub.s32 %v516, %v518
      %v520 = vrot.slane %v512, %v519
      %v522 = vunpack.c.l.s4 1966171168
      %v523 = vunpack.c.0.s8 %v522
      %v524 = vlaneseq
      %v525 = vshrl.u32 %v524, 7
      %v526 = vsub.s32 %v523, %v525
      %v527 = vrot.slane %v513, %v526
      %v528 = vcombine.low %v520, %v527
      %v530 = vunpack.c.l.s4 1966171168
      %v531 = vunpack.c.0.s8 %v530
      %v532 = vlaneseq
      %v533 = vshrl.u32 %v532, 7
      %v534 = vsub.s32 %v531, %v533
      %v535 = vrot.slane %v528, %v534
      %536 = vset.pattern.permute.xlu0 0
      %537 = vperm.xlu0 %536, %v535
      %v538 = vpop.permute.xlu0 %537
      %v539 = vlaneseq
      %v540 = vshrl.u32 %v539, 7
      %v541 = vsub.s32 %v389, %v540
      %v542 = vrot.slane %v538, %v541
      %v544 = vunpack.c.l.s4 1966171168
      %v545 = vunpack.c.0.s8 %v544
      %v546 = vlaneseq
      %v547 = vshrl.u32 %v546, 7
      %v548 = vsub.s32 %v545, %v547
      %v549 = vrot.slane %v542, %v548
      %v551 = vunpack.c.l.s4 1966171168
      %v552 = vunpack.c.0.s8 %v551
      %v553 = vlaneseq
      %v554 = vshrl.u32 %v553, 7
      %v555 = vsub.s32 %v552, %v554
      %v556 = vrot.slane %v549, %v555
      %v558 = vadd.f32 %v486, %v556
      %559 = vst.msk [vmem:[#allocation4] sm:$0x1] %vm410, %v558
      // Predicated region
      $region33: #{dice_loss.1} parent=27 // pred_check
        %p560 = pneg %p275
      $region34: #{dice_loss.1} parent=27 // pred_check_branch
        %562 = sbr.rel (%p560) target = $region36
      $region35: #{dice_loss.1} parent=27 // pred_region
        %v563 = vld [vmem:[#allocation2] sm:$0x1]
        %564 = vst.msk [vmem:[%s268] sm:$0x1] %vm410, %v563
        %v565 = vld [vmem:[#allocation3] sm:$0x1]
        %566 = vst.msk [vmem:[%s271] sm:$0x1] %vm410, %v565
        %v567 = vld [vmem:[#allocation4] sm:$0x1]
        %568 = vst.msk [vmem:[%s274] sm:$0x1] %vm410, %v567
      $region36: #{dice_loss.1} parent=27 // pred_fallthru
        _
      %p569 = scmp.lt.s32.totalorder %s20, 1
      %s570 = scalar_select %p569, %s20, 1
      %s571 = scalar_lea.vmem %s2, %s570
      %p572 = scmp.lt.s32.totalorder %s20, 1
      %s573 = scalar_select %p572, %s20, 1
      %s574 = scalar_lea.vmem %s3, %s573
      %p575 = scmp.lt.s32.totalorder %s20, 1
      %s576 = scalar_select %p575, %s20, 1
      %s577 = scalar_lea.vmem %s4, %s576
      // Predicated region
      $region37: #{dice_loss.1} parent=27 // pred_check
        %p578 = pneg %p102
      $region38: #{dice_loss.1} parent=27 // pred_check_branch
        %580 = sbr.rel (%p578) target = $region40
      $region39: #{dice_loss.1} parent=27 // pred_region
        _
      $region40: #{dice_loss.1} parent=27 // pred_fallthru
        _
      // Predicated region
      $region41: #{dice_loss.1} parent=27 // pred_check
        %p581 = pneg %p128
      $region42: #{dice_loss.1} parent=27 // pred_check_branch
        %583 = sbr.rel (%p581) target = $region44
      $region43: #{dice_loss.1} parent=27 // pred_region
        _
      $region44: #{dice_loss.1} parent=27 // pred_fallthru
        _
      // Predicated region
      $region45: #{dice_loss.1} parent=27 // pred_check
        %p584 = pneg %p154
      $region46: #{dice_loss.1} parent=27 // pred_check_branch
        %586 = sbr.rel (%p584) target = $region48
      $region47: #{dice_loss.1} parent=27 // pred_region
        _
      $region48: #{dice_loss.1} parent=27 // pred_fallthru
        _
    $region28: #{dice_loss.1} parent=5 // pred_fallthru
      _
    %p587 = scmp.le.s32.totalorder 2, %s11
    // Predicated region
    $region49: #{dice_loss.1} parent=5 // pred_check
      %p588 = pneg %p587
    $region50: #{dice_loss.1} parent=5 // pred_check_branch
      %590 = sbr.rel (%p588) target = $region52
    $region51: #{dice_loss.1} parent=5 // pred_region
      %s591 = ssub.s32 %s11, 2
      // Predicated region
      $region53: #{dice_loss.1} parent=51 // pred_check
        %p592 = pneg %p108
      $region54: #{dice_loss.1} parent=51 // pred_check_branch
        %594 = sbr.rel (%p592) target = $region56
      $region55: #{dice_loss.1} parent=51 // pred_region
        %p595 = scmp.lt.s32.totalorder %s22, 1
        %s596 = scalar_select %p595, %s22, 1
        %s597 = scalar_lea.vmem %s2, %s596
      $region56: #{dice_loss.1} parent=51 // pred_fallthru
        _
      // Predicated region
      $region57: #{dice_loss.1} parent=51 // pred_check
        %p598 = pneg %p134
      $region58: #{dice_loss.1} parent=51 // pred_check_branch
        %600 = sbr.rel (%p598) target = $region60
      $region59: #{dice_loss.1} parent=51 // pred_region
        %p601 = scmp.lt.s32.totalorder %s22, 1
        %s602 = scalar_select %p601, %s22, 1
        %s603 = scalar_lea.vmem %s3, %s602
      $region60: #{dice_loss.1} parent=51 // pred_fallthru
        _
      // Predicated region
      $region61: #{dice_loss.1} parent=51 // pred_check
        %p604 = pneg %p160
      $region62: #{dice_loss.1} parent=51 // pred_check_branch
        %606 = sbr.rel (%p604) target = $region64
      $region63: #{dice_loss.1} parent=51 // pred_region
        %p607 = scmp.lt.s32.totalorder %s22, 1
        %s608 = scalar_select %p607, %s22, 1
        %s609 = scalar_lea.vmem %s4, %s608
      $region64: #{dice_loss.1} parent=51 // pred_fallthru
        _
    $region52: #{dice_loss.1} parent=5 // pred_fallthru
      _
  $region6: #{dice_loss.1} parent=0 // loop_footer
    %s15 = sadd.s32 1, %s11
  $region7: #{dice_loss.1} parent=0 // loop_footer_branch
    %10 = sbr.rel target = $region3
  $region8: #{dice_loss.1} parent=0 // loop_exit
    _

</llo_original>
